<compile_context>
chip_gen: v7x
topology: tpu7x:2x2x1
jax: 0.10.0
libtpu: 0.0.40
codegen_flags: <defaults>
</compile_context>

<pallas_src>
import jax
import jax.numpy as jnp
from jax import lax
from jax.experimental import pallas as pl
from jax.experimental.pallas import tpu as pltpu

_LANES = 128
_SUBLANES = 8
_TILE = _LANES * _SUBLANES  # 1024


def _vmem_capacity_bytes():
    """Physical VMEM per TensorCore; conservative fallback if the query fails."""
    try:
        return int(pltpu.get_tpu_info().vmem_capacity_bytes)
    except Exception:
        return 64 << 20  # v7x per-TC VMEM; safe lower bound for v5e/v6e too


def _make_kernel(TB, TJ, Bt, prows):
    groups = prows // _SUBLANES
    static_chunk = (Bt % TJ == 0)   # every target chunk is completely valid
    full_unroll = bool(TJ <= 8)

    def kernel(out_ref, tgt_ref, partial_ref):
        # out_ref:     (TB, prows, 128)  TB flattened/padded output planes
        # tgt_ref:     (TJ, prows, 128)  one chunk of flattened/padded target planes
        # partial_ref: (TB, 8, 128) i32  exact per-output-plane match counts,
        #                                revisited (accumulated) across the j axis
        j = pl.program_id(1)

        @pl.when(j == 0)
        def _init():
            partial_ref[...] = jnp.zeros_like(partial_ref)

        if static_chunk:
            upper = TJ                                   # static trip count
        else:
            upper = jnp.minimum(TJ, Bt - j * TJ)         # skip padded target planes

        for ti in range(TB):                             # static, TB <= 8
            out_plane = out_ref[ti]                      # (prows, 128)

            def body(b, acc):
                # Fused cmp -> cast -> fold onto a single (8,128) tile; pure
                # VPU elementwise work, no cross-lane reduce in the hot path.
                eq = (out_plane == tgt_ref[b]).astype(jnp.int32)          # (prows,128)
                return acc + eq.reshape(groups, _SUBLANES, _LANES).sum(axis=0)

            acc0 = jnp.zeros((_SUBLANES, _LANES), jnp.int32)
            if static_chunk:
                acc = lax.fori_loop(0, upper, body, acc0, unroll=full_unroll)
            else:
                acc = lax.fori_loop(0, upper, body, acc0)
            partial_ref[ti] += acc

    return kernel


def acc_score(output, target):
    """output: (B,1,H,W); target: (Bt,H,W).  Returns a scalar float32 score."""
    B, C, H, W = output.shape
    assert C == 1, "AccScore expects output with a single channel"
    Bt, Ht, Wt = target.shape
    assert (Ht, Wt) == (H, W), "target spatial dims must match output"

    # PyTorch `==` promotes dtypes; do the same once, outside the kernel.
    # TODO(synk): for small-range class maps, downcast to int8/int16 here to
    # shrink HBM traffic and the VMEM-resident target 4x.
    common = jnp.promote_types(output.dtype, target.dtype)

    P = H * W
    Ppad = pl.cdiv(P, _TILE) * _TILE
    prows = Ppad // _LANES
    pad = Ppad - P

    out_flat = output.reshape(B, P).astype(common)
    tgt_flat = target.reshape(Bt, P).astype(common)
    if pad:
        # Different pad constants -> padded positions never spuriously match.
        out_flat = jnp.pad(out_flat, ((0, 0), (0, pad)), constant_values=0)
        tgt_flat = jnp.pad(tgt_flat, ((0, 0), (0, pad)), constant_values=1)

    # ---- Tiling decisions (generation-aware VMEM budget) --------------------
    itemsize = jnp.dtype(common).itemsize
    plane_bytes = prows * _LANES * itemsize

    TB = min(B, 8)                         # output planes per grid step
    B_pad = pl.cdiv(B, TB) * TB

    vmem_cap = _vmem_capacity_bytes()
    budget = (vmem_cap * 3) // 4           # headroom for Mosaic internals

    # Fixed residency: double-buffered output block, revisited partial block,
    # worst-case (prows,128) int32 compare intermediate, misc headroom.
    fixed = (2 * TB * plane_bytes
             + 2 * TB * _SUBLANES * _LANES * 4
             + prows * _LANES * 4
             + (2 << 20))

    if Bt * plane_bytes + fixed <= budget:
        # Whole target VMEM-resident; constant block index -> single buffer.
        TJ, n_j, tgt_bufs = Bt, 1, 1
    else:
        # Stream the target in double-buffered chunks over a reduction axis.
        TJ = max(1, int((budget - fixed) // (2 * plane_bytes)))
        TJ = min(TJ, Bt)
        n_j = pl.cdiv(Bt, TJ)
        tgt_bufs = 2

    # Pad batches so block shapes divide array shapes exactly; padded output
    # planes are sliced off the partials, padded target planes are skipped by
    # the in-kernel dynamic loop bound.
    out_flat = jnp.pad(out_flat, ((0, B_pad - B), (0, 0)))
    tgt_flat = jnp.pad(tgt_flat, ((0, n_j * TJ - Bt), (0, 0)))
    out_p = out_flat.reshape(B_pad, prows, _LANES)
    tgt_p = tgt_flat.reshape(n_j * TJ, prows, _LANES)

    # vmem_limit_bytes reflects the *actual* residency (it cannot shrink demand);
    # the tiling above already guarantees demand <= budget < cap.
    actual = tgt_bufs * TJ * plane_bytes + fixed
    vmem_limit = int(min((vmem_cap * 9) // 10, max(actual + (8 << 20), 32 << 20)))

    tgt_spec_kwargs = {}
    if n_j == 1:
        # Constant block index: a second pipeline buffer is pure waste.
        tgt_spec_kwargs["pipeline_mode"] = pl.Buffered(1)

    partials = pl.pallas_call(
        _make_kernel(TB, TJ, Bt, prows),
        out_shape=jax.ShapeDtypeStruct((B_pad, _SUBLANES, _LANES), jnp.int32),
        grid_spec=pltpu.PrefetchScalarGridSpec(
            num_scalar_prefetch=0,
            grid=(B_pad // TB, n_j),
            in_specs=[
                pl.BlockSpec((TB, prows, _LANES), lambda i, j: (i, 0, 0)),
                pl.BlockSpec((TJ, prows, _LANES), lambda i, j: (j, 0, 0),
                             **tgt_spec_kwargs),
            ],
            out_specs=pl.BlockSpec((TB, _SUBLANES, _LANES),
                                   lambda i, j: (i, 0, 0)),
        ),
        # TODO(synk): on v7x, pltpu.CORE_PARALLEL on the first axis would split
        # the B axis across both TensorCores (verify in xprof); kept as plain
        # "parallel" here so the kernel compiles unchanged on v5e/v6e.
        compiler_params=pltpu.CompilerParams(
            dimension_semantics=("parallel", "arbitrary"),
            vmem_limit_bytes=vmem_limit,
        ),
    )(out_p, tgt_p)

    # Exact integer reduce (int64 if x64 enabled); float only for the divide.
    sum_dtype = jnp.int64 if getattr(jax.config, "jax_enable_x64", False) else jnp.int32
    matches = jnp.sum(partials[:B], dtype=sum_dtype)
    denom = float(Bt * Ht * Wt)            # PyTorch divides by target.numel()
    return matches.astype(jnp.float32) / jnp.float32(denom)


if __name__ == "__main__":
    key = jax.random.PRNGKey(0)
    k_out, k_tgt = jax.random.split(key)

    B, H, W = 2, 16, 16
    # Integer "class maps" so equality is non-trivial.
    output = jax.random.randint(k_out, (B, 1, H, W), 0, 4, dtype=jnp.int32)
    target = jax.random.randint(k_tgt, (B, H, W), 0, 4, dtype=jnp.int32)

    score = jax.block_until_ready(acc_score(output, target))

    # Pure-JAX reference mirroring PyTorch broadcasting of (B,1,H,W)==(Bt,H,W)
    # and the target.numel() denominator.
    ref = jnp.sum((output == target[None, ...]).astype(jnp.float32)) / float(target.size)

    assert jnp.allclose(score, ref, atol=1e-6), (score, ref)
    print("KERNEL_OK")
</pallas_src>

<mosaic_0001>
module attributes {stable_mosaic.version = 11 : i64} {
  func.func @kernel(%arg0: i32, %arg1: i32, %arg2: memref<2x8x128xi32, #tpu.memory_space<vmem>>, %arg3: memref<2x8x128xi32, #tpu.memory_space<vmem>>, %arg4: memref<2x8x128xi32, #tpu.memory_space<vmem>>) attributes {dimension_semantics = [#tpu.dimension_semantics<parallel>, #tpu.dimension_semantics<arbitrary>], iteration_bounds = array<i64: 1, 1>, scalar_prefetch = 0 : i64, scratch_operands = 0 : i64, tpu.core_type = #tpu.core_type<tc>, window_params = [{transform_indices = @transform_0, window_bounds = array<i64: 2, 8, 128>}, {pipeline_mode = #tpu.pipeline_mode<synchronous>, transform_indices = @transform_1, window_bounds = array<i64: 2, 8, 128>}, {transform_indices = @transform_2, window_bounds = array<i64: 2, 8, 128>}]} {
    %c0_i32 = arith.constant 0 : i32
    %0 = arith.cmpi eq, %arg1, %c0_i32 : i32
    %1 = arith.extui %0 : i1 to i32
    %c0_i32_0 = arith.constant 0 : i32
    %2 = arith.cmpi ne, %1, %c0_i32_0 : i32
    scf.if %2 {
      %c0_i32_34 = arith.constant 0 : i32
      %53 = vector.broadcast %c0_i32_34 : i32 to vector<2x8x128xi32>
      %c0_35 = arith.constant 0 : index
      %c0_36 = arith.constant 0 : index
      %c0_37 = arith.constant 0 : index
      %54 = vector.load %arg4[%c0_35, %c0_36, %c0_37] : memref<2x8x128xi32, #tpu.memory_space<vmem>>, vector<2x8x128xi32>
      tpu.vector_store %arg4[%c0_35, %c0_36, %c0_37], %53 {strides = array<i32>} : memref<2x8x128xi32, #tpu.memory_space<vmem>>, vector<2x8x128xi32>,
    } else {
    }
    %c0 = arith.constant 0 : index
    %c0_1 = arith.constant 0 : index
    %c0_2 = arith.constant 0 : index
    %3 = vector.load %arg2[%c0, %c0_1, %c0_2] : memref<2x8x128xi32, #tpu.memory_space<vmem>>, vector<1x8x128xi32>
    %4 = vector.shape_cast %3 : vector<1x8x128xi32> to vector<8x128xi32>
    %c0_i32_3 = arith.constant 0 : i32
    %5 = vector.broadcast %c0_i32_3 : i32 to vector<8x128xi32>
    %c0_i32_4 = arith.constant 0 : i32
    %6 = arith.index_cast %c0_i32_4 : i32 to index
    %c0_5 = arith.constant 0 : index
    %c0_6 = arith.constant 0 : index
    %7 = vector.load %arg3[%6, %c0_5, %c0_6] : memref<2x8x128xi32, #tpu.memory_space<vmem>>, vector<1x8x128xi32>
    %8 = vector.shape_cast %7 : vector<1x8x128xi32> to vector<8x128xi32>
    %9 = arith.cmpi eq, %4, %8 : vector<8x128xi32>
    %10 = arith.extui %9 : vector<8x128xi1> to vector<8x128xi32>
    %11 = vector.shape_cast %10 : vector<8x128xi32> to vector<1x8x128xi32>
    %cst = arith.constant dense<0> : vector<8x128xi32>
    %12 = vector.multi_reduction <add>, %11, %cst [0] : vector<1x8x128xi32> to vector<8x128xi32>
    %13 = arith.addi %5, %12 : vector<8x128xi32>
    %c1_i32 = arith.constant 1 : i32
    %14 = arith.index_cast %c1_i32 : i32 to index
    %c0_7 = arith.constant 0 : index
    %c0_8 = arith.constant 0 : index
    %15 = vector.load %arg3[%14, %c0_7, %c0_8] : memref<2x8x128xi32, #tpu.memory_space<vmem>>, vector<1x8x128xi32>
    %16 = vector.shape_cast %15 : vector<1x8x128xi32> to vector<8x128xi32>
    %17 = arith.cmpi eq, %4, %16 : vector<8x128xi32>
    %18 = arith.extui %17 : vector<8x128xi1> to vector<8x128xi32>
    %19 = vector.shape_cast %18 : vector<8x128xi32> to vector<1x8x128xi32>
    %cst_9 = arith.constant dense<0> : vector<8x128xi32>
    %20 = vector.multi_reduction <add>, %19, %cst_9 [0] : vector<1x8x128xi32> to vector<8x128xi32>
    %21 = arith.addi %13, %20 : vector<8x128xi32>
    %c2_i32 = arith.constant 2 : i32
    %c0_10 = arith.constant 0 : index
    %c0_11 = arith.constant 0 : index
    %c0_12 = arith.constant 0 : index
    %22 = vector.load %arg4[%c0_10, %c0_11, %c0_12] : memref<2x8x128xi32, #tpu.memory_space<vmem>>, vector<1x8x128xi32>
    %23 = vector.shape_cast %22 : vector<1x8x128xi32> to vector<8x128xi32>
    %24 = arith.addi %23, %21 : vector<8x128xi32>
    %c0_13 = arith.constant 0 : index
    %c0_14 = arith.constant 0 : index
    %c0_15 = arith.constant 0 : index
    %25 = vector.load %arg4[%c0_13, %c0_14, %c0_15] : memref<2x8x128xi32, #tpu.memory_space<vmem>>, vector<1x8x128xi32>
    %26 = vector.shape_cast %25 : vector<1x8x128xi32> to vector<8x128xi32>
    %27 = vector.shape_cast %24 : vector<8x128xi32> to vector<1x8x128xi32>
    tpu.vector_store %arg4[%c0_13, %c0_14, %c0_15], %27 {strides = array<i32>} : memref<2x8x128xi32, #tpu.memory_space<vmem>>, vector<1x8x128xi32>,
    %c1 = arith.constant 1 : index
    %c0_16 = arith.constant 0 : index
    %c0_17 = arith.constant 0 : index
    %28 = vector.load %arg2[%c1, %c0_16, %c0_17] : memref<2x8x128xi32, #tpu.memory_space<vmem>>, vector<1x8x128xi32>
    %29 = vector.shape_cast %28 : vector<1x8x128xi32> to vector<8x128xi32>
    %c0_i32_18 = arith.constant 0 : i32
    %30 = vector.broadcast %c0_i32_18 : i32 to vector<8x128xi32>
    %c0_i32_19 = arith.constant 0 : i32
    %31 = arith.index_cast %c0_i32_19 : i32 to index
    %c0_20 = arith.constant 0 : index
    %c0_21 = arith.constant 0 : index
    %32 = vector.load %arg3[%31, %c0_20, %c0_21] : memref<2x8x128xi32, #tpu.memory_space<vmem>>, vector<1x8x128xi32>
    %33 = vector.shape_cast %32 : vector<1x8x128xi32> to vector<8x128xi32>
    %34 = arith.cmpi eq, %29, %33 : vector<8x128xi32>
    %35 = arith.extui %34 : vector<8x128xi1> to vector<8x128xi32>
    %36 = vector.shape_cast %35 : vector<8x128xi32> to vector<1x8x128xi32>
    %cst_22 = arith.constant dense<0> : vector<8x128xi32>
    %37 = vector.multi_reduction <add>, %36, %cst_22 [0] : vector<1x8x128xi32> to vector<8x128xi32>
    %38 = arith.addi %30, %37 : vector<8x128xi32>
    %c1_i32_23 = arith.constant 1 : i32
    %39 = arith.index_cast %c1_i32_23 : i32 to index
    %c0_24 = arith.constant 0 : index
    %c0_25 = arith.constant 0 : index
    %40 = vector.load %arg3[%39, %c0_24, %c0_25] : memref<2x8x128xi32, #tpu.memory_space<vmem>>, vector<1x8x128xi32>
    %41 = vector.shape_cast %40 : vector<1x8x128xi32> to vector<8x128xi32>
    %42 = arith.cmpi eq, %29, %41 : vector<8x128xi32>
    %43 = arith.extui %42 : vector<8x128xi1> to vector<8x128xi32>
    %44 = vector.shape_cast %43 : vector<8x128xi32> to vector<1x8x128xi32>
    %cst_26 = arith.constant dense<0> : vector<8x128xi32>
    %45 = vector.multi_reduction <add>, %44, %cst_26 [0] : vector<1x8x128xi32> to vector<8x128xi32>
    %46 = arith.addi %38, %45 : vector<8x128xi32>
    %c2_i32_27 = arith.constant 2 : i32
    %c1_28 = arith.constant 1 : index
    %c0_29 = arith.constant 0 : index
    %c0_30 = arith.constant 0 : index
    %47 = vector.load %arg4[%c1_28, %c0_29, %c0_30] : memref<2x8x128xi32, #tpu.memory_space<vmem>>, vector<1x8x128xi32>
    %48 = vector.shape_cast %47 : vector<1x8x128xi32> to vector<8x128xi32>
    %49 = arith.addi %48, %46 : vector<8x128xi32>
    %c1_31 = arith.constant 1 : index
    %c0_32 = arith.constant 0 : index
    %c0_33 = arith.constant 0 : index
    %50 = vector.load %arg4[%c1_31, %c0_32, %c0_33] : memref<2x8x128xi32, #tpu.memory_space<vmem>>, vector<1x8x128xi32>
    %51 = vector.shape_cast %50 : vector<1x8x128xi32> to vector<8x128xi32>
    %52 = vector.shape_cast %49 : vector<8x128xi32> to vector<1x8x128xi32>
    tpu.vector_store %arg4[%c1_31, %c0_32, %c0_33], %52 {strides = array<i32>} : memref<2x8x128xi32, #tpu.memory_space<vmem>>, vector<1x8x128xi32>,
    return
  }
  func.func @transform_0(%arg0: i32, %arg1: i32) -> (i32, i32, i32) {
    %c0_i32 = arith.constant 0 : i32
    %c0_i32_0 = arith.constant 0 : i32
    %c0_i32_1 = arith.constant 0 : i32
    return %arg0, %c0_i32, %c0_i32_0 : i32, i32, i32
  }
  func.func @transform_1(%arg0: i32, %arg1: i32) -> (i32, i32, i32) {
    %c0_i32 = arith.constant 0 : i32
    %c0_i32_0 = arith.constant 0 : i32
    %c0_i32_1 = arith.constant 0 : i32
    return %arg1, %c0_i32, %c0_i32_0 : i32, i32, i32
  }
  func.func @transform_2(%arg0: i32, %arg1: i32) -> (i32, i32, i32) {
    %c0_i32 = arith.constant 0 : i32
    %c0_i32_0 = arith.constant 0 : i32
    %c0_i32_1 = arith.constant 0 : i32
    return %arg0, %c0_i32, %c0_i32_0 : i32, i32, i32
  }
}

</mosaic_0001>

<llo_original>
// kernel: tpu_custom_call.1
$region0: #{tpu_custom_call.1}
  #allocation0 [shape = 'u32[]', space=smem, size = 0x4, offset = 0x4, fixed_abs, tag = 'smem constant byte address 0x4 - core index']
  #allocation1 [shape = 'u32[144,128]{1,0:T(1,128)}', space=vmem, size = 0x12000, scoped, tag = 'internal scratch']
  %s0 = inlined_call_operand.hbm [shape: s32[2,8,128], index: 0, kind: input, shape index: {}]
  %s1 = inlined_call_operand.hbm [shape: s32[2,8,128], index: 1, kind: input, shape index: {}]
  %s2 = inlined_call_operand.hbm [shape: s32[2,8,128], index: 2, kind: output, shape index: {}]
  %s3 = sld [smem:[#allocation0]]
  $region30: #{tpu_custom_call.1} parent=0
    _
  %s5 = ssub.s32 1, %s3
  %s6 = scalar_select 0, %s5, %s3
  $region1: #{tpu_custom_call.1} parent=0
    #allocation2 [shape = 'u8[8192]{0}', space=vmem, size = 0x2000, scoped, tag = 'input window, operand 0, single buffered']
    #allocation3 [shape = 's32[1]{0}', space=sflag, size = 0x4, scoped, tag = 'scoped memory for tpu_custom_call.1']
    #allocation4 [shape = 's32[1]{0}', space=sflag, size = 0x4, scoped, tag = 'scoped memory for tpu_custom_call.1']
    #allocation5 [shape = 'u8[8192]{0}', space=vmem, size = 0x2000, scoped, tag = 'input window, operand 1, single buffered']
    #allocation6 [shape = 's32[1]{0}', space=sflag, size = 0x4, scoped, tag = 'scoped memory for tpu_custom_call.1']
    #allocation7 [shape = 'u8[8192]{0}', space=vmem, size = 0x2000, scoped, tag = 'output window, operand 0, single buffered']
    %7 = vsyncpa [#allocation3], 0
    %8 = vsyncpa [#allocation6], 0
    %9 = vsyncpa [#allocation4], 0
    // Predicated region
    $region2: #{tpu_custom_call.1} parent=1 // pred_check
      _
    $region3: #{tpu_custom_call.1} parent=1 // pred_check_branch
      %11 = sbr.rel (0) target = $region5
    $region4: #{tpu_custom_call.1} parent=1 // pred_region
      %s13 = ssub.s32 256, 256
      %14 = vsyncadd [#allocation3], %s13
      %s15 = sshll.u32 [#allocation2], 4
      %s16 = int_to_ptr.vmem [resolvable:$true] %s15
      %21 = dma.hbm_to_vmem [thread:$0]  %s0, 256, %s16, [#allocation3], 128, 128, 8
    $region5: #{tpu_custom_call.1} parent=1 // pred_fallthru
      _
    // Predicated region
    $region6: #{tpu_custom_call.1} parent=1 // pred_check
      _
    $region7: #{tpu_custom_call.1} parent=1 // pred_check_branch
      %23 = sbr.rel (0) target = $region9
    $region8: #{tpu_custom_call.1} parent=1 // pred_region
      %s25 = ssub.s32 256, 256
      %26 = vsyncadd [#allocation6], %s25
      %s27 = sshll.u32 [#allocation5], 4
      %s28 = int_to_ptr.vmem [resolvable:$true] %s27
      %33 = dma.hbm_to_vmem [thread:$0]  %s1, 256, %s28, [#allocation6], 128, 128, 8
    $region9: #{tpu_custom_call.1} parent=1 // pred_fallthru
      _
    // Predicated region
    $region10: #{tpu_custom_call.1} parent=1 // pred_check
      _
    $region11: #{tpu_custom_call.1} parent=1 // pred_check_branch
      %35 = sbr.rel (0) target = $region13
    $region12: #{tpu_custom_call.1} parent=1 // pred_region
      %36 = dma.done [#allocation3], 256
    $region13: #{tpu_custom_call.1} parent=1 // pred_fallthru
      _
    // Predicated region
    $region14: #{tpu_custom_call.1} parent=1 // pred_check
      _
    $region15: #{tpu_custom_call.1} parent=1 // pred_check_branch
      %38 = sbr.rel (0) target = $region17
    $region16: #{tpu_custom_call.1} parent=1 // pred_region
      %39 = dma.done [#allocation6], 256
    $region17: #{tpu_custom_call.1} parent=1 // pred_fallthru
      _
    %p40 = scmp.eq.s32.totalorder 0, 0
    // Predicated region
    $region18: #{tpu_custom_call.1} parent=1 // pred_check
      %p41 = pneg %p40
    $region19: #{tpu_custom_call.1} parent=1 // pred_check_branch
      %43 = sbr.rel (%p41) target = $region21
    $region20: #{tpu_custom_call.1} parent=1 // pred_region
      %44 = vst [vmem:[#allocation7] sm:$0xff] 0
      %45 = vst [vmem:[#allocation7 + $0x8] sm:$0xff] 0
    $region21: #{tpu_custom_call.1} parent=1 // pred_fallthru
      _
    %v46 = vld [vmem:[#allocation2] sm:$0xff]
    %v47 = vld [vmem:[#allocation5] sm:$0xff]
    %vm48 = vcmp.eq.s32.totalorder %v46, %v47
    %v49 = vsel %vm48, 1, 0
    %s50 = scalar_lea.vmem [#allocation5], 8
    %v51 = vld [vmem:[%s50] sm:$0xff]
    %vm52 = vcmp.eq.s32.totalorder %v46, %v51
    %v53 = vsel %vm52, 1, 0
    %v54 = vadd.s32 %v49, %v53
    %v55 = vld [vmem:[#allocation7] sm:$0xff]
    %v56 = vadd.s32 %v55, %v54
    %57 = vst [vmem:[#allocation7] sm:$0xff] %v56
    %s58 = scalar_lea.vmem [#allocation2], 8
    %v59 = vld [vmem:[%s58] sm:$0xff]
    %v60 = vld [vmem:[#allocation5] sm:$0xff]
    %vm61 = vcmp.eq.s32.totalorder %v59, %v60
    %v62 = vsel %vm61, 1, 0
    %v63 = vld [vmem:[%s50] sm:$0xff]
    %vm64 = vcmp.eq.s32.totalorder %v59, %v63
    %v65 = vsel %vm64, 1, 0
    %v66 = vadd.s32 %v62, %v65
    %s67 = scalar_lea.vmem [#allocation7], 8
    %v68 = vld [vmem:[%s67] sm:$0xff]
    %v69 = vadd.s32 %v68, %v66
    %70 = vst [vmem:[%s67] sm:$0xff] %v69
    // Predicated region
    $region22: #{tpu_custom_call.1} parent=1 // pred_check
      _
    $region23: #{tpu_custom_call.1} parent=1 // pred_check_branch
      %72 = sbr.rel (0) target = $region25
    $region24: #{tpu_custom_call.1} parent=1 // pred_region
      %s74 = ssub.s32 256, 256
      %75 = vsyncadd [#allocation4], %s74
      %s76 = sshll.u32 [#allocation7], 4
      %s77 = int_to_ptr.vmem [resolvable:$true] %s76
      %82 = dma.vmem_to_hbm [thread:$0]  %s77, 256, %s2, [#allocation4], 128, 128, 8
    $region25: #{tpu_custom_call.1} parent=1 // pred_fallthru
      _
    // Predicated region
    $region26: #{tpu_custom_call.1} parent=1 // pred_check
      _
    $region27: #{tpu_custom_call.1} parent=1 // pred_check_branch
      %84 = sbr.rel (0) target = $region29
    $region28: #{tpu_custom_call.1} parent=1 // pred_region
      %85 = dma.done [#allocation4], 256
    $region29: #{tpu_custom_call.1} parent=1 // pred_fallthru
      _
    %86 = vsyncpa [#allocation3], 1
    %87 = vsyncpa [#allocation6], 1
    %88 = vsyncpa [#allocation4], 1

</llo_original>
